<compile_context>
chip_gen: v5e
topology: v5e:2x2
jax: 0.10.0
libtpu: 0.0.40
codegen_flags: <defaults>
</compile_context>

<pallas_src>
import functools
import math

import jax
import jax.numpy as jnp
from jax import lax
from jax.experimental import pallas as pl
from jax.experimental.pallas import tpu as pltpu


def _round_up(x, m):
    return ((x + m - 1) // m) * m


def _conv1d_same_kernel(xa_ref, xh_ref, w_ref, b_ref, o_ref, *, K, stride, TL):
    # xa_ref: (1, stride, C, TL)   phase-split input, positions [j*TL, (j+1)*TL)
    #                              xa[0, r, c, t] == x_padded[c, t*stride + r]
    # xh_ref: (1, stride, C, 128)  halo: the next 128 phase positions
    # w_ref : (O, K*C)             fused weight, w_ref[o, k*C + c] == W[o, c, k]
    # b_ref : (O, 1)               bias
    # o_ref : (1, O, TL)           output tile j for this batch element
    win = jnp.concatenate([xa_ref[0], xh_ref[0]], axis=-1)   # (stride, C, TL+128)

    taps = []
    for k in range(K):                 # static unroll; all slices are static
        r, d = k % stride, k // stride
        taps.append(win[r, :, d:d + TL])                      # (C, TL)
    slab = taps[0] if K == 1 else jnp.concatenate(taps, axis=0)  # (K*C, TL)

    # Single fused MXU matmul, f32 accumulation.
    y = jnp.dot(w_ref[...], slab, preferred_element_type=jnp.float32)  # (O, TL)
    o_ref[0] = (y + b_ref[...]).astype(o_ref.dtype)


def conv1d_padding_same(x, weight, bias, stride):
    """Pallas implementation of Conv1dPaddingSame.forward (dilation=1, groups=1)."""
    B, C, L = x.shape
    O, C_w, K = weight.shape
    assert C_w == C

    # ---- exactly mirror the PyTorch module's padding arithmetic -------------
    out_length = L // stride if L % stride == 0 else L // stride + 1
    pad = math.ceil((out_length * stride + K - L - stride) / 2)
    assert pad >= 0, "negative padding not supported (matches F.conv1d behavior)"
    L_out = (L + 2 * pad - K) // stride + 1   # F.conv1d output length with `pad`

    # ---- pad channels to a multiple of 8 (zero weights => no effect) --------
    C_pad = _round_up(C, 8)
    if C_pad != C:
        x = jnp.pad(x, ((0, 0), (0, C_pad - C), (0, 0)))
        weight = jnp.pad(weight, ((0, 0), (0, C_pad - C), (0, 0)))

    # ---- tiling along the output length -------------------------------------
    TL = min(512, _round_up(L_out, 128))      # lane-dense, 128-aligned tile
    L_out_pad = _round_up(L_out, TL)
    n_tiles = L_out_pad // TL
    m = TL // 128                              # halo block index multiplier

    # ---- phase-split the padded input (layout glue only, no K-x HBM blowup) -
    # Output position t, tap k reads x_pad[t*stride + k]
    #                             == x_ph[k % stride, t + k // stride].
    halo = (K - 1) // stride
    assert halo <= 128, "kernel taps span more than the 128-lane halo block"
    L_ph = L_out_pad + TL                      # extra tile worth of halo/zeros
    total = stride * L_ph
    x_pad = jnp.pad(x, ((0, 0), (0, 0), (pad, pad)))
    cur = x_pad.shape[-1]
    if cur < total:
        x_pad = jnp.pad(x_pad, ((0, 0), (0, 0), (0, total - cur)))
    elif cur > total:
        x_pad = x_pad[:, :, :total]            # tail beyond `total` never read
    # (B, C, L_ph, stride) -> (B, stride, C, L_ph); x_ph[b,r,c,t] = x_pad[b,c,t*s+r]
    x_ph = x_pad.reshape(B, C_pad, L_ph, stride).transpose(0, 3, 1, 2)

    # ---- fused weight layout: w2[o, k*C + c] = weight[o, c, k] ---------------
    w2 = jnp.transpose(weight, (0, 2, 1)).reshape(O, K * C_pad)
    bias2 = bias.reshape(O, 1)

    itemsize = jnp.dtype(x.dtype).itemsize
    cost = pl.CostEstimate(
        flops=2 * B * O * K * C_pad * L_out_pad,
        transcendentals=0,
        bytes_accessed=itemsize * (x_ph.size + w2.size + bias2.size
                                   + B * O * L_out_pad),
    )

    kernel = functools.partial(_conv1d_same_kernel, K=K, stride=stride, TL=TL)
    out = pl.pallas_call(
        kernel,
        out_shape=jax.ShapeDtypeStruct((B, O, L_out_pad), x.dtype),
        grid=(B, n_tiles),
        in_specs=[
            # main tile: phase positions [j*TL, (j+1)*TL)
            pl.BlockSpec((1, stride, C_pad, TL), lambda b, j: (b, 0, 0, j)),
            # halo: the next 128 phase positions (128-sized blocks along L_ph)
            pl.BlockSpec((1, stride, C_pad, 128),
                         lambda b, j: (b, 0, 0, (j + 1) * m)),
            pl.BlockSpec((O, K * C_pad), lambda b, j: (0, 0)),
            pl.BlockSpec((O, 1), lambda b, j: (0, 0)),
        ],
        out_specs=pl.BlockSpec((1, O, TL), lambda b, j: (b, 0, j)),
        compiler_params=pltpu.CompilerParams(
            dimension_semantics=("parallel", "parallel"),
            vmem_limit_bytes=32 * 1024 * 1024,
        ),
        cost_estimate=cost,
    )(x_ph, x_ph, w2, bias2)

    return out[:, :, :L_out]


def _reference(x, weight, bias, stride):
    """Pure-JAX reference mirroring F.conv1d with the module's padding."""
    B, C, L = x.shape
    O, _, K = weight.shape
    if L % stride == 0:
        out_length = L // stride
    else:
        out_length = L // stride + 1
    pad = math.ceil((out_length * stride + K - L - stride) / 2)
    y = lax.conv_general_dilated(
        x, weight,
        window_strides=(stride,),
        padding=[(pad, pad)],
        dimension_numbers=("NCH", "OIH", "NCH"),
    )
    return y + bias[None, :, None]


if __name__ == "__main__":
    # Small shapes consistent with the module: batch=2, in_channels=4,
    # out_channels=8, length=16, kernel_size=3, stride=2.
    B, C_in, C_out, L, K, stride = 2, 4, 8, 16, 3, 2

    key = jax.random.PRNGKey(0)
    kx, kw, kb = jax.random.split(key, 3)
    x = jax.random.uniform(kx, (B, C_in, L), dtype=jnp.float32)
    # torch.rand -> uniform [0, 1)
    weight = jax.random.uniform(kw, (C_out, C_in, K), dtype=jnp.float32)
    bias = jax.random.uniform(kb, (C_out,), dtype=jnp.float32)

    out = conv1d_padding_same(x, weight, bias, stride)
    out = jax.block_until_ready(out)

    ref = _reference(x, weight, bias, stride)
    assert out.shape == ref.shape, (out.shape, ref.shape)
    assert jnp.allclose(out, ref, atol=1e-5, rtol=1e-5)

    print("KERNEL_OK")
</pallas_src>

<mosaic_0001>
module attributes {stable_mosaic.version = 11 : i64} {
  func.func @_conv1d_same_kernel(%arg0: i32, %arg1: i32, %arg2: memref<1x2x8x128xf32, #tpu.memory_space<vmem>>, %arg3: memref<1x2x8x128xf32, #tpu.memory_space<vmem>>, %arg4: memref<8x24xf32, #tpu.memory_space<vmem>>, %arg5: memref<8x1xf32, #tpu.memory_space<vmem>>, %arg6: memref<1x8x128xf32, #tpu.memory_space<vmem>>) attributes {dimension_semantics = [#tpu.dimension_semantics<parallel>, #tpu.dimension_semantics<parallel>], iteration_bounds = array<i64: 2, 1>, scalar_prefetch = 0 : i64, scratch_operands = 0 : i64, tpu.core_type = #tpu.core_type<tc>, window_params = [{transform_indices = @transform_0, window_bounds = array<i64: 1, 2, 8, 128>}, {transform_indices = @transform_1, window_bounds = array<i64: 1, 2, 8, 128>}, {pipeline_mode = #tpu.pipeline_mode<synchronous>, transform_indices = @transform_2, window_bounds = array<i64: 8, 24>}, {pipeline_mode = #tpu.pipeline_mode<synchronous>, transform_indices = @transform_3, window_bounds = array<i64: 8, 1>}, {transform_indices = @transform_4, window_bounds = array<i64: 1, 8, 128>}]} {
    %c0 = arith.constant 0 : index
    %c0_0 = arith.constant 0 : index
    %c0_1 = arith.constant 0 : index
    %c0_2 = arith.constant 0 : index
    %0 = vector.load %arg2[%c0, %c0_0, %c0_1, %c0_2] : memref<1x2x8x128xf32, #tpu.memory_space<vmem>>, vector<1x2x8x128xf32>
    %1 = vector.shape_cast %0 : vector<1x2x8x128xf32> to vector<2x8x128xf32>
    %c0_3 = arith.constant 0 : index
    %c0_4 = arith.constant 0 : index
    %c0_5 = arith.constant 0 : index
    %c0_6 = arith.constant 0 : index
    %2 = vector.load %arg3[%c0_3, %c0_4, %c0_5, %c0_6] : memref<1x2x8x128xf32, #tpu.memory_space<vmem>>, vector<1x2x8x128xf32>
    %3 = vector.shape_cast %2 : vector<1x2x8x128xf32> to vector<2x8x128xf32>
    %4 = tpu.concatenate %1, %3 in 2 : vector<2x8x128xf32>, vector<2x8x128xf32> -> vector<2x8x256xf32>
    %5 = vector.extract_strided_slice %4 {offsets = [0, 0, 0], sizes = [1, 8, 128], strides = [1, 1, 1]} : vector<2x8x256xf32> to vector<1x8x128xf32>
    %6 = vector.shape_cast %5 : vector<1x8x128xf32> to vector<8x128xf32>
    %7 = vector.extract_strided_slice %4 {offsets = [1, 0, 0], sizes = [1, 8, 128], strides = [1, 1, 1]} : vector<2x8x256xf32> to vector<1x8x128xf32>
    %8 = vector.shape_cast %7 : vector<1x8x128xf32> to vector<8x128xf32>
    %9 = vector.extract_strided_slice %4 {offsets = [0, 0, 1], sizes = [1, 8, 128], strides = [1, 1, 1]} : vector<2x8x256xf32> to vector<1x8x128xf32>
    %10 = vector.shape_cast %9 : vector<1x8x128xf32> to vector<8x128xf32>
    %11 = tpu.concatenate %6, %8, %10 in 0 : vector<8x128xf32>, vector<8x128xf32>, vector<8x128xf32> -> vector<24x128xf32>
    %c0_7 = arith.constant 0 : index
    %c0_8 = arith.constant 0 : index
    %12 = vector.load %arg4[%c0_7, %c0_8] : memref<8x24xf32, #tpu.memory_space<vmem>>, vector<8x24xf32>
    %cst = arith.constant dense<0.000000e+00> : vector<8x128xf32>
    %13 = tpu.matmul %12, %11, %cst {dimension_numbers = #tpu.dot_dimension_numbers<[1], [0], [0], [1], [0, 0, 1, 1], [], []>} : vector<8x24xf32>, vector<24x128xf32>, vector<8x128xf32> -> vector<8x128xf32>
    %c0_9 = arith.constant 0 : index
    %c0_10 = arith.constant 0 : index
    %14 = vector.load %arg5[%c0_9, %c0_10] : memref<8x1xf32, #tpu.memory_space<vmem>>, vector<8x1xf32>
    %15 = vector.broadcast %14 : vector<8x1xf32> to vector<8x128xf32>
    %16 = arith.addf %13, %15 : vector<8x128xf32>
    %c0_11 = arith.constant 0 : index
    %c0_12 = arith.constant 0 : index
    %c0_13 = arith.constant 0 : index
    %17 = vector.load %arg6[%c0_11, %c0_12, %c0_13] : memref<1x8x128xf32, #tpu.memory_space<vmem>>, vector<1x8x128xf32>
    %18 = vector.shape_cast %17 : vector<1x8x128xf32> to vector<8x128xf32>
    %19 = vector.shape_cast %16 : vector<8x128xf32> to vector<1x8x128xf32>
    tpu.vector_store %arg6[%c0_11, %c0_12, %c0_13], %19 {strides = array<i32>} : memref<1x8x128xf32, #tpu.memory_space<vmem>>, vector<1x8x128xf32>,
    return
  }
  func.func @transform_0(%arg0: i32, %arg1: i32) -> (i32, i32, i32, i32) {
    %c0_i32 = arith.constant 0 : i32
    %c0_i32_0 = arith.constant 0 : i32
    %c0_i32_1 = arith.constant 0 : i32
    return %arg0, %c0_i32, %c0_i32_0, %arg1 : i32, i32, i32, i32
  }
  func.func @transform_1(%arg0: i32, %arg1: i32) -> (i32, i32, i32, i32) {
    %c1_i32 = arith.constant 1 : i32
    %0 = arith.addi %arg1, %c1_i32 : i32
    %c1_i32_0 = arith.constant 1 : i32
    %1 = arith.muli %0, %c1_i32_0 : i32
    %c0_i32 = arith.constant 0 : i32
    %c0_i32_1 = arith.constant 0 : i32
    %c0_i32_2 = arith.constant 0 : i32
    return %arg0, %c0_i32, %c0_i32_1, %1 : i32, i32, i32, i32
  }
  func.func @transform_2(%arg0: i32, %arg1: i32) -> (i32, i32) {
    %c0_i32 = arith.constant 0 : i32
    %c0_i32_0 = arith.constant 0 : i32
    %c0_i32_1 = arith.constant 0 : i32
    return %c0_i32, %c0_i32_0 : i32, i32
  }
  func.func @transform_3(%arg0: i32, %arg1: i32) -> (i32, i32) {
    %c0_i32 = arith.constant 0 : i32
    %c0_i32_0 = arith.constant 0 : i32
    %c0_i32_1 = arith.constant 0 : i32
    return %c0_i32, %c0_i32_0 : i32, i32
  }
  func.func @transform_4(%arg0: i32, %arg1: i32) -> (i32, i32, i32) {
    %c0_i32 = arith.constant 0 : i32
    %c0_i32_0 = arith.constant 0 : i32
    return %arg0, %c0_i32, %arg1 : i32, i32, i32
  }
}

</mosaic_0001>

<llo_original>
// kernel: tpu_custom_call.1
$region0: #{tpu_custom_call.1}
  #allocation0 [shape = 'u32[]', space=smem, size = 0x4, offset = 0x4, fixed_abs, tag = 'smem constant byte address 0x4 - core index']
  #allocation1 [shape = 'u32[72,128]{1,0:T(1,128)}', space=vmem, size = 0x9000, scoped, tag = 'internal scratch']
  %s0 = inlined_call_operand.hbm [shape: f32[2,2,8,256], index: 0, kind: input, shape index: {}]
  %s1 = inlined_call_operand.hbm [shape: f32[2,2,8,256], index: 1, kind: input, shape index: {}]
  %s2 = inlined_call_operand.vmem [shape: f32[8,24], index: 2, kind: input, shape index: {}]
  %s3 = inlined_call_operand.vmem [shape: f32[8,1], index: 3, kind: input, shape index: {}]
  %s4 = inlined_call_operand.hbm [shape: f32[2,8,128], index: 4, kind: output, shape index: {}]
  %s5 = sld [smem:[#allocation0]]
  $region57: #{tpu_custom_call.1} parent=0
    _
  %s7 = ssub.s32 1, %s5
  %s8 = scalar_select 0, %s7, %s5
  $region1: #{tpu_custom_call.1} parent=0
    #allocation2 [shape = 'u8[16384]{0}', space=vmem, size = 0x4000, scoped, tag = 'input window, operand 0']
    #allocation3 [shape = 's32[2]{0}', space=sflag, size = 0x8, scoped, tag = 'scoped memory for tpu_custom_call.1']
    #allocation4 [shape = 's32[2]{0}', space=sflag, size = 0x8, scoped, tag = 'scoped memory for tpu_custom_call.1']
    #allocation5 [shape = 'u8[16384]{0}', space=vmem, size = 0x4000, scoped, tag = 'input window, operand 1']
    #allocation6 [shape = 's32[2]{0}', space=sflag, size = 0x8, scoped, tag = 'scoped memory for tpu_custom_call.1']
    #allocation7 [shape = 'u8[8192]{0}', space=vmem, size = 0x2000, scoped, tag = 'output window, operand 0']
    %9 = vsyncpa [#allocation3], 0
    %s10 = scalar_lea.sflag [#allocation3], 1
    %11 = vsyncpa %s10, 0
    %12 = vsyncpa [#allocation6], 0
    %s13 = scalar_lea.sflag [#allocation6], 1
    %14 = vsyncpa %s13, 0
    %15 = vsyncpa [#allocation4], 0
    %s16 = scalar_lea.sflag [#allocation4], 1
    %17 = vsyncpa %s16, 0
    loop: start=0, step=1, limit=4
    $region2: #{tpu_custom_call.1} parent=1 // loop_pre_header
      _
    $region3: #{tpu_custom_call.1} parent=1 // loop_header
      %s19 = sphi 0, %s23
      %p20 = scmp.ge.s32.totalorder %s19, 4
      %s26 = sphi 0, %s38
      %s27 = sphi 0, %s34
      %s28 = sphi 0, %s26
      %s29 = sphi 0, %s27
      %s30 = sphi 0, %s28
      %s31 = sphi 0, %s29
      %s43 = sphi 0, %s45
      %s46 = sphi 0, %s43
      %s47 = sphi 0, %s46
      %s63 = sphi 0, %s47
      %s73 = sphi 0, %s75
      %s76 = sphi 0, %s73
      %s77 = sphi 0, %s76
      %s93 = sphi 0, %s77
      %s97 = sphi 0, %s97
      %s99 = sphi 0, %s97
      %s100 = sphi 0, %s99
      %s114 = sphi 0, %s100
      %s118 = sphi 0, %s118
      %s120 = sphi 0, %s118
      %s121 = sphi 0, %s120
      %s135 = sphi 0, %s121
      %s143 = sphi 0, %s145
      %s146 = sphi 0, %s143
      %s147 = sphi 0, %s146
      %s163 = sphi 0, %s147
    $region4: #{tpu_custom_call.1} parent=1 // loop_header_branch
      %22 = sbr.rel (%p20) target = $region8
    $region5: #{tpu_custom_call.1} parent=1 // loop_body
      %s24 = ssub.s32 %s19, 1
      %s25 = ssub.s32 %s19, 2
      %s32 = sadd.s32 1, %s27
      %p33 = scmp.ge.s32.totalorder %s32, 1
      %s34 = scalar_select %p33, 0, %s32
      %s35 = sadd.s32 1, %s26
      %s36 = scalar_select %p33, %s35, %s26
      %p37 = scmp.ge.s32.totalorder %s36, 2
      %s38 = scalar_select %p37, 0, %s36
      %s39 = ssub.s32 %s26, %s38
      %s40 = ssub.s32 %s27, %s34
      %s41 = sor.u32 %s39, %s40
      %p42 = scmp.eq.s32.totalorder %s41, 0
      %s44 = sadd.s32 %s43, 1
      %s45 = scalar_select %p42, %s43, %s44
      %p48 = pneg %p42
      %p49 = scmp.eq.s32.totalorder %s19, 1
      %p50 = por %p48, %p49
      %p51 = scmp.ne.s32.totalorder %s43, %s46
      %p52 = scmp.eq.s32.totalorder %s19, 0
      %p53 = por %p51, %p52
      %p54 = scmp.ne.s32.totalorder %s43, %s46
      %p55 = scmp.eq.s32.totalorder %s24, 1
      %p56 = por %p54, %p55
      %p57 = scmp.ne.s32.totalorder %s46, %s47
      %p58 = scmp.eq.s32.totalorder %s24, 0
      %p59 = por %p57, %p58
      %p60 = scmp.ne.s32.totalorder %s46, %s47
      %p61 = scmp.eq.s32.totalorder %s25, 1
      %p62 = por %p60, %p61
      %p64 = scmp.ne.s32.totalorder %s47, %s63
      %p65 = scmp.eq.s32.totalorder %s25, 0
      %p66 = por %p64, %p65
      %s67 = sadd.s32 %s27, 1
      %s68 = sadd.s32 %s34, 1
      %s69 = ssub.s32 %s26, %s38
      %s70 = ssub.s32 %s67, %s68
      %s71 = sor.u32 %s69, %s70
      %p72 = scmp.eq.s32.totalorder %s71, 0
      %s74 = sadd.s32 %s73, 1
      %s75 = scalar_select %p72, %s73, %s74
      %p78 = pneg %p72
      %p79 = scmp.eq.s32.totalorder %s19, 1
      %p80 = por %p78, %p79
      %p81 = scmp.ne.s32.totalorder %s73, %s76
      %p82 = scmp.eq.s32.totalorder %s19, 0
      %p83 = por %p81, %p82
      %p84 = scmp.ne.s32.totalorder %s73, %s76
      %p85 = scmp.eq.s32.totalorder %s24, 1
      %p86 = por %p84, %p85
      %p87 = scmp.ne.s32.totalorder %s76, %s77
      %p88 = scmp.eq.s32.totalorder %s24, 0
      %p89 = por %p87, %p88
      %p90 = scmp.ne.s32.totalorder %s76, %s77
      %p91 = scmp.eq.s32.totalorder %s25, 1
      %p92 = por %p90, %p91
      %p94 = scmp.ne.s32.totalorder %s77, %s93
      %p95 = scmp.eq.s32.totalorder %s25, 0
      %p96 = por %p94, %p95
      %s98 = sadd.s32 %s97, 1
      %p101 = scmp.eq.s32.totalorder %s19, 1
      %p102 = scmp.ne.s32.totalorder %s97, %s99
      %p103 = scmp.eq.s32.totalorder %s19, 0
      %p104 = por %p102, %p103
      %p105 = scmp.ne.s32.totalorder %s97, %s99
      %p106 = scmp.eq.s32.totalorder %s24, 1
      %p107 = por %p105, %p106
      %p108 = scmp.ne.s32.totalorder %s99, %s100
      %p109 = scmp.eq.s32.totalorder %s24, 0
      %p110 = por %p108, %p109
      %p111 = scmp.ne.s32.totalorder %s99, %s100
      %p112 = scmp.eq.s32.totalorder %s25, 1
      %p113 = por %p111, %p112
      %p115 = scmp.ne.s32.totalorder %s100, %s114
      %p116 = scmp.eq.s32.totalorder %s25, 0
      %p117 = por %p115, %p116
      %s119 = sadd.s32 %s118, 1
      %p122 = scmp.eq.s32.totalorder %s19, 1
      %p123 = scmp.ne.s32.totalorder %s118, %s120
      %p124 = scmp.eq.s32.totalorder %s19, 0
      %p125 = por %p123, %p124
      %p126 = scmp.ne.s32.totalorder %s118, %s120
      %p127 = scmp.eq.s32.totalorder %s24, 1
      %p128 = por %p126, %p127
      %p129 = scmp.ne.s32.totalorder %s120, %s121
      %p130 = scmp.eq.s32.totalorder %s24, 0
      %p131 = por %p129, %p130
      %p132 = scmp.ne.s32.totalorder %s120, %s121
      %p133 = scmp.eq.s32.totalorder %s25, 1
      %p134 = por %p132, %p133
      %p136 = scmp.ne.s32.totalorder %s121, %s135
      %p137 = scmp.eq.s32.totalorder %s25, 0
      %p138 = por %p136, %p137
      %s139 = ssub.s32 %s26, %s38
      %s140 = ssub.s32 %s27, %s34
      %s141 = sor.u32 %s139, %s140
      %p142 = scmp.eq.s32.totalorder %s141, 0
      %s144 = sadd.s32 %s143, 1
      %s145 = scalar_select %p142, %s143, %s144
      %p148 = pneg %p142
      %p149 = scmp.eq.s32.totalorder %s19, 1
      %p150 = por %p148, %p149
      %p151 = scmp.ne.s32.totalorder %s143, %s146
      %p152 = scmp.eq.s32.totalorder %s19, 0
      %p153 = por %p151, %p152
      %p154 = scmp.ne.s32.totalorder %s143, %s146
      %p155 = scmp.eq.s32.totalorder %s24, 1
      %p156 = por %p154, %p155
      %p157 = scmp.ne.s32.totalorder %s146, %s147
      %p158 = scmp.eq.s32.totalorder %s24, 0
      %p159 = por %p157, %p158
      %p160 = scmp.ne.s32.totalorder %s146, %s147
      %p161 = scmp.eq.s32.totalorder %s25, 1
      %p162 = por %p160, %p161
      %p164 = scmp.ne.s32.totalorder %s147, %s163
      %p165 = scmp.eq.s32.totalorder %s25, 0
      %p166 = por %p164, %p165
      %p167 = scmp.le.s32.totalorder 1, %s19
      %p168 = scmp.lt.s32.totalorder %s19, 3
      %p169 = pnand %p167, %p168
      %p170 = pneg %p169
      // Predicated region
      $region9: #{tpu_custom_call.1} parent=5 // pred_check
        _
      $region10: #{tpu_custom_call.1} parent=5 // pred_check_branch
        %172 = sbr.rel (%p169) target = $region12
      $region11: #{tpu_custom_call.1} parent=5 // pred_region
        %s173 = ssub.s32 %s19, 1
        // Predicated region
        $region13: #{tpu_custom_call.1} parent=11 // pred_check
          %p174 = pneg %p110
        $region14: #{tpu_custom_call.1} parent=11 // pred_check_branch
          %176 = sbr.rel (%p174) target = $region16
        $region15: #{tpu_custom_call.1} parent=11 // pred_region
          _
        $region16: #{tpu_custom_call.1} parent=11 // pred_fallthru
          _
        // Predicated region
        $region17: #{tpu_custom_call.1} parent=11 // pred_check
          %p177 = pneg %p131
        $region18: #{tpu_custom_call.1} parent=11 // pred_check_branch
          %179 = sbr.rel (%p177) target = $region20
        $region19: #{tpu_custom_call.1} parent=11 // pred_region
          _
        $region20: #{tpu_custom_call.1} parent=11 // pred_fallthru
          _
      $region12: #{tpu_custom_call.1} parent=5 // pred_fallthru
        _
      %p180 = scmp.lt.s32.totalorder %s19, 2
      // Predicated region
      $region21: #{tpu_custom_call.1} parent=5 // pred_check
        %p181 = pneg %p180
      $region22: #{tpu_custom_call.1} parent=5 // pred_check_branch
        %183 = sbr.rel (%p181) target = $region24
      $region23: #{tpu_custom_call.1} parent=5 // pred_region
        // Predicated region
        $region25: #{tpu_custom_call.1} parent=23 // pred_check
          %p184 = pneg %p53
        $region26: #{tpu_custom_call.1} parent=23 // pred_check_branch
          %186 = sbr.rel (%p184) target = $region28
        $region27: #{tpu_custom_call.1} parent=23 // pred_region
          %s187 = sand.u32 %s43, 1
          %s188 = scalar_lea.sflag [#allocation3], %s187
          %s189 = sand.u32 %s43, 1
          %s190 = smul.addr %s189, 16
          %s191 = scalar_lea.vmem [#allocation2], %s190
          %193 = vsyncadd %s188, 0
          %s194 = smul.addr %s26, 4
          %s195 = sadd.s32 %s27, %s194
          %s196 = smul.addr %s195, 8
          %s197 = scalar_lea.hbm %s0, %s196
          %s198 = sshll.u32 %s197, 4
          %s199 = int_to_ptr.hbm [resolvable:$true] %s198
          %s200 = sshll.u32 %s191, 4
          %s201 = int_to_ptr.vmem [resolvable:$true] %s200
          %206 = dma.hbm_to_vmem [thread:$0]  %s199, 256, %s201, %s188, 256, 128, 8
        $region28: #{tpu_custom_call.1} parent=23 // pred_fallthru
          _
        // Predicated region
        $region29: #{tpu_custom_call.1} parent=23 // pred_check
          %p207 = pneg %p83
        $region30: #{tpu_custom_call.1} parent=23 // pred_check_branch
          %209 = sbr.rel (%p207) target = $region32
        $region31: #{tpu_custom_call.1} parent=23 // pred_region
          %s210 = sand.u32 %s73, 1
          %s211 = scalar_lea.sflag [#allocation6], %s210
          %s212 = sand.u32 %s73, 1
          %s213 = smul.addr %s212, 16
          %s214 = scalar_lea.vmem [#allocation5], %s213
          %s215 = sadd.s32 %s27, 1
          %217 = vsyncadd %s211, 0
          %s218 = smul.addr %s26, 4
          %s219 = sadd.s32 %s215, %s218
          %s220 = smul.addr %s219, 8
          %s221 = scalar_lea.hbm %s1, %s220
          %s222 = sshll.u32 %s221, 4
          %s223 = int_to_ptr.hbm [resolvable:$true] %s222
          %s224 = sshll.u32 %s214, 4
          %s225 = int_to_ptr.vmem [resolvable:$true] %s224
          %230 = dma.hbm_to_vmem [thread:$0]  %s223, 256, %s225, %s211, 256, 128, 8
        $region32: #{tpu_custom_call.1} parent=23 // pred_fallthru
          _
      $region24: #{tpu_custom_call.1} parent=5 // pred_fallthru
        _
      %p231 = scmp.le.s32.totalorder 1, %s19
      %p232 = scmp.lt.s32.totalorder %s19, 3
      %p233 = pnand %p231, %p232
      %p234 = pneg %p233
      // Predicated region
      $region33: #{tpu_custom_call.1} parent=5 // pred_check
        _
      $region34: #{tpu_custom_call.1} parent=5 // pred_check_branch
        %236 = sbr.rel (%p233) target = $region36
      $region35: #{tpu_custom_call.1} parent=5 // pred_region
        %s237 = ssub.s32 %s19, 1
        %s238 = sand.u32 %s46, 1
        %s239 = scalar_lea.sflag [#allocation3], %s238
        %s240 = sand.u32 %s46, 1
        %s241 = smul.addr %s240, 16
        %s242 = scalar_lea.vmem [#allocation2], %s241
        // Predicated region
        $region37: #{tpu_custom_call.1} parent=35 // pred_check
          %p243 = pneg %p59
        $region38: #{tpu_custom_call.1} parent=35 // pred_check_branch
          %245 = sbr.rel (%p243) target = $region40
        $region39: #{tpu_custom_call.1} parent=35 // pred_region
          %247 = dma.done %s239, 256
        $region40: #{tpu_custom_call.1} parent=35 // pred_fallthru
          _
        %s248 = sand.u32 %s76, 1
        %s249 = scalar_lea.sflag [#allocation6], %s248
        %s250 = sand.u32 %s76, 1
        %s251 = smul.addr %s250, 16
        %s252 = scalar_lea.vmem [#allocation5], %s251
        // Predicated region
        $region41: #{tpu_custom_call.1} parent=35 // pred_check
          %p253 = pneg %p89
        $region42: #{tpu_custom_call.1} parent=35 // pred_check_branch
          %255 = sbr.rel (%p253) target = $region44
        $region43: #{tpu_custom_call.1} parent=35 // pred_region
          %257 = dma.done %s249, 256
        $region44: #{tpu_custom_call.1} parent=35 // pred_fallthru
          _
        %s258 = sand.u32 %s46, 1
        %s259 = scalar_lea.sflag [#allocation3], %s258
        %s260 = sand.u32 %s46, 1
        %s261 = smul.addr %s260, 16
        %s262 = scalar_lea.vmem [#allocation2], %s261
        %p263 = pneg %p59
        %p264 = pneg %p56
        %s265 = sand.u32 %s76, 1
        %s266 = scalar_lea.sflag [#allocation6], %s265
        %s267 = sand.u32 %s76, 1
        %s268 = smul.addr %s267, 16
        %s269 = scalar_lea.vmem [#allocation5], %s268
        %p270 = pneg %p89
        %p271 = pneg %p86
        %p272 = pneg %p110
        %p273 = pneg %p107
        %p274 = pneg %p131
        %p275 = pneg %p128
        %p276 = pneg %p159
        %p277 = pneg %p156
        %s278 = sand.u32 %s146, 1
        %s279 = scalar_lea.sflag [#allocation4], %s278
        %s280 = sand.u32 %s146, 1
        %s281 = smul.addr %s280, 8
        %s282 = scalar_lea.vmem [#allocation7], %s281
        %s283 = sadd.s32 %s29, 1
        %v284 = vld [vmem:[%s242] sm:$0xff]
        %v285 = vld [vmem:[%s242 + $0x8] sm:$0xff]
        %v286 = vld [vmem:[%s252] sm:$0xff]
        %289 = vrot.lane.b32.xlu0 %v284, 127
        %v290 = vpop.permute.xlu0 %289
        %291 = vrot.lane.b32.xlu0 %v286, 127
        %v292 = vpop.permute.xlu0 %291
        %vm293 = vcmask 1039360
        %v294 = vsel %vm293, %v290, %v292
        %v296 = vld [vmem:[%s2] sm:$0xff]
        %v297 = vld [vmem:[%s3] sm:$0xff]
        %299 = vset.pattern.permute.xlu0 0
        %300 = vperm.xlu0 %299, %v297
        %v301 = vpop.permute.xlu0 %300
        %vm303 = vcmask 195584
        %v305 = vsel %vm303, %v296, 0
        %307 = vmatpush.msra.mxu0 0.0
        %308 = vmatpush.msra.mxu0 0.0
        %309 = vmatpush.msra.mxu0 0.0
        %310 = vmatpush.msra.mxu0 0.0
        %311 = vmatpush.msra.mxu0 0.0
        %312 = vmatpush.msra.mxu0 0.0
        %313 = vmatpush.msra.mxu0 0.0
        %314 = vmatpush.msra.mxu0 0.0
        %315 = vmatpush.msra.mxu0 0.0
        %316 = vmatpush.msra.mxu0 0.0
        %317 = vmatpush.msra.mxu0 0.0
        %318 = vmatpush.msra.mxu0 0.0
        %319 = vmatpush.msra.mxu0 0.0
        %320 = vmatpush.msra.mxu0 %v294
        %321 = vmatpush.msra.mxu0 %v285
        %322 = vmatpush.msra.mxu0 %v284
        %323 = vmatmul.f32.gmra.mxu0 %v305
        %v324 = vpop.f32.mrf.mxu0
        %v325 = vadd.f32 %v301, %v324
        %326 = vdwg.mxu0
        %327 = vst [vmem:[%s282] sm:$0xff] %v325
        %s328 = sand.u32 %s146, 1
        %s329 = scalar_lea.sflag [#allocation4], %s328
        %s330 = sand.u32 %s146, 1
        %s331 = smul.addr %s330, 8
        %s332 = scalar_lea.vmem [#allocation7], %s331
        // Predicated region
        $region45: #{tpu_custom_call.1} parent=35 // pred_check
          %p333 = pneg %p156
        $region46: #{tpu_custom_call.1} parent=35 // pred_check_branch
          %335 = sbr.rel (%p333) target = $region48
        $region47: #{tpu_custom_call.1} parent=35 // pred_region
          %337 = vsyncadd %s329, 0
          %s338 = sadd.s32 %s29, %s28
          %s339 = smul.addr %s338, 8
          %s340 = scalar_lea.hbm %s4, %s339
          %s342 = sshll.u32 %s332, 4
          %s343 = int_to_ptr.vmem [resolvable:$true] %s342
          %s344 = sshll.u32 %s340, 4
          %s345 = int_to_ptr.hbm [resolvable:$true] %s344
          %347 = dma.vmem_to_hbm [thread:$0]  %s343, 128, %s345, %s329
        $region48: #{tpu_custom_call.1} parent=35 // pred_fallthru
          _
      $region36: #{tpu_custom_call.1} parent=5 // pred_fallthru
        _
      %p348 = scmp.le.s32.totalorder 2, %s19
      // Predicated region
      $region49: #{tpu_custom_call.1} parent=5 // pred_check
        %p349 = pneg %p348
      $region50: #{tpu_custom_call.1} parent=5 // pred_check_branch
        %351 = sbr.rel (%p349) target = $region52
      $region51: #{tpu_custom_call.1} parent=5 // pred_region
        %s352 = ssub.s32 %s19, 2
        // Predicated region
        $region53: #{tpu_custom_call.1} parent=51 // pred_check
          %p353 = pneg %p162
        $region54: #{tpu_custom_call.1} parent=51 // pred_check_branch
          %355 = sbr.rel (%p353) target = $region56
        $region55: #{tpu_custom_call.1} parent=51 // pred_region
          %s356 = sand.u32 %s147, 1
          %s357 = scalar_lea.sflag [#allocation4], %s356
          %s358 = sand.u32 %s147, 1
          %s359 = smul.addr %s358, 8
          %s360 = scalar_lea.vmem [#allocation7], %s359
          %362 = dma.done %s357, 128
        $region56: #{tpu_custom_call.1} parent=51 // pred_fallthru
          _
      $region52: #{tpu_custom_call.1} parent=5 // pred_fallthru
        _
    $region6: #{tpu_custom_call.1} parent=1 // loop_footer
      %s23 = sadd.s32 1, %s19
    $region7: #{tpu_custom_call.1} parent=1 // loop_footer_branch
      %18 = sbr.rel target = $region3
    $region8: #{tpu_custom_call.1} parent=1 // loop_exit
      _
    %363 = vsyncpa [#allocation3], 1
    %s364 = scalar_lea.sflag [#allocation3], 1
    %365 = vsyncpa %s364, 1
    %366 = vsyncpa [#allocation6], 1
    %s367 = scalar_lea.sflag [#allocation6], 1
    %368 = vsyncpa %s367, 1
    %369 = vsyncpa [#allocation4], 1
    %s370 = scalar_lea.sflag [#allocation4], 1
    %371 = vsyncpa %s370, 1

</llo_original>
